<compile_context>
chip_gen: v6e
topology: v6e:2x2x1
jax: 0.10.0
libtpu: 0.0.40
codegen_flags: <defaults>
</compile_context>

<pallas_src>
import functools

import jax
import jax.numpy as jnp
import numpy as np
from jax.experimental import pallas as pl
from jax.experimental.pallas import tpu as pltpu


def _round_up(x, m):
    return ((x + m - 1) // m) * m


def _conv_bias_prelu_kernel(alpha_ref, x_ref, w_ref, b_ref, out_ref, *,
                            kh, kw, img_w, l_out):
    """One grid step = one image (channels on sublanes, flat spatial on lanes).

    alpha_ref: SMEM (1,)                  shared PReLU slope
    x_ref:     VMEM (1, Cin, L_in)        flattened NCHW image, lane-padded
    w_ref:     VMEM (Kh*Kw, Cout, Cin)    per-tap weight matrices
    b_ref:     VMEM (Cout, 1)             bias column
    out_ref:   VMEM (1, Cout, L_out)      flattened NCHW output (lane-dense)
    """
    # Shifted-matmul accumulation with a register-level chain: no im2col slab,
    # no VMEM accumulator, no per-tap read-modify-write.
    acc = None
    for i in range(kh):
        for j in range(kw):
            d = i * img_w + j                       # tap offset in flat space
            patch = x_ref[0, :, d:d + l_out]        # (Cin, L_out) lane window
            part = jnp.dot(w_ref[i * kw + j], patch,
                           preferred_element_type=jnp.float32)
            acc = part if acc is None else acc + part

    # Fused epilogue: bias + PReLU, written straight to the output block.
    y = acc + b_ref[...]                            # (Cout, 1) lane-broadcast
    alpha = alpha_ref[0]
    out_ref[0] = jnp.where(y > 0.0, y, alpha * y).astype(out_ref.dtype)


def _conv2d_prelu_nchw(x, weight, bias, alpha):
    """Conv2d(stride=1, 'VALID') + bias + PReLU, NCHW in -> NCHW out.

    x: (N, Cin, H, W) f32; weight: (Cout, Cin, Kh, Kw); bias: (Cout,);
    alpha: (1,).  Returns (N, Cout, Ho, Wo) f32.
    """
    n, cin, h, w = x.shape
    cout, _, kh, kw = weight.shape
    ho, wo = h - kh + 1, w - kw + 1

    halo = (kh - 1) * w + (kw - 1)          # max flat tap offset
    l_out = _round_up(h * w, 128)           # lane-dense output width
    l_in = _round_up(l_out + halo, 128)     # output window + tap halo

    x_flat = x.reshape(n, cin, h * w)       # free view (NCHW is contiguous)
    if l_in > h * w:
        x_flat = jnp.pad(x_flat, ((0, 0), (0, 0), (0, l_in - h * w)))

    # (Cout, Cin, Kh, Kw) -> (Kh*Kw, Cout, Cin): one (Cout, Cin) matrix per tap.
    w_taps = jnp.transpose(weight, (2, 3, 0, 1)).reshape(kh * kw, cout, cin)
    b_col = bias.reshape(cout, 1)

    kernel = functools.partial(_conv_bias_prelu_kernel,
                               kh=kh, kw=kw, img_w=w, l_out=l_out)

    out_flat = pl.pallas_call(
        kernel,
        out_shape=jax.ShapeDtypeStruct((n, cout, l_out), jnp.float32),
        grid=(n,),
        in_specs=[
            pl.BlockSpec(memory_space=pltpu.SMEM),                     # alpha
            pl.BlockSpec((1, cin, l_in), lambda i: (i, 0, 0)),         # image
            pl.BlockSpec((kh * kw, cout, cin), lambda i: (0, 0, 0)),   # weights
            pl.BlockSpec((cout, 1), lambda i: (0, 0)),                 # bias
        ],
        out_specs=pl.BlockSpec((1, cout, l_out), lambda i: (i, 0, 0)),
        compiler_params=pltpu.CompilerParams(
            dimension_semantics=("parallel",),
            # Far above this kernel's ~50 KiB working set; safely inside the
            # v7x 64 MiB physical budget as well as v5e/v6e.
            vmem_limit_bytes=32 * 1024 * 1024,
        ),
    )(alpha, x_flat, w_taps, b_col)

    # Single cheap valid-region slice on the small, non-inflated output.
    out = out_flat[:, :, :h * w].reshape(n, cout, h, w)
    return out[:, :, :ho, :wo]


@jax.jit
def conv2d_layer(x, weight, bias, alpha):
    """NCHW-facing wrapper matching the PyTorch module (no layout transposes)."""
    return _conv2d_prelu_nchw(x, weight, bias, alpha)


if __name__ == "__main__":
    key = jax.random.PRNGKey(0)
    k_x, k_w, k_b = jax.random.split(key, 3)

    N, CIN, COUT, H, W = 2, 4, 8, 16, 16
    KH, KW = 3, 3

    x = jax.random.normal(k_x, (N, CIN, H, W), dtype=jnp.float32)
    fan_in = CIN * KH * KW
    bound = 1.0 / np.sqrt(fan_in)
    weight = jax.random.uniform(
        k_w, (COUT, CIN, KH, KW), dtype=jnp.float32, minval=-bound, maxval=bound
    )
    bias = jax.random.uniform(
        k_b, (COUT,), dtype=jnp.float32, minval=-bound, maxval=bound
    )
    alpha = jnp.array([0.25], dtype=jnp.float32)  # nn.PReLU default init

    out = conv2d_layer(x, weight, bias, alpha)
    out = jax.block_until_ready(out)

    # Pure-JAX reference (f32 end-to-end, so 1e-5 tolerance holds).
    ref = jax.lax.conv_general_dilated(
        x, weight, window_strides=(1, 1), padding="VALID",
        dimension_numbers=("NCHW", "OIHW", "NCHW"),
    )
    ref = ref + bias[None, :, None, None]
    ref = jnp.where(ref > 0, ref, alpha[0] * ref)

    assert out.shape == (N, COUT, H - KH + 1, W - KW + 1), out.shape
    np.testing.assert_allclose(np.asarray(out), np.asarray(ref), rtol=1e-5, atol=1e-5)
    print("KERNEL_OK")
</pallas_src>

<mosaic_0001>
module attributes {stable_mosaic.version = 11 : i64} {
  func.func @_conv_bias_prelu_kernel(%arg0: i32, %arg1: memref<1xf32, #tpu.memory_space<smem>>, %arg2: memref<1x4x384xf32, #tpu.memory_space<vmem>>, %arg3: memref<9x8x4xf32, #tpu.memory_space<vmem>>, %arg4: memref<8x1xf32, #tpu.memory_space<vmem>>, %arg5: memref<1x8x256xf32, #tpu.memory_space<vmem>>) attributes {dimension_semantics = [#tpu.dimension_semantics<parallel>], iteration_bounds = array<i64: 2>, scalar_prefetch = 0 : i64, scratch_operands = 0 : i64, tpu.core_type = #tpu.core_type<tc>, window_params = [{transform_indices = @transform_0, window_bounds = array<i64: 1>}, {transform_indices = @transform_1, window_bounds = array<i64: 1, 4, 384>}, {pipeline_mode = #tpu.pipeline_mode<synchronous>, transform_indices = @transform_2, window_bounds = array<i64: 9, 8, 4>}, {pipeline_mode = #tpu.pipeline_mode<synchronous>, transform_indices = @transform_3, window_bounds = array<i64: 8, 1>}, {transform_indices = @transform_4, window_bounds = array<i64: 1, 8, 256>}]} {
    %c0 = arith.constant 0 : index
    %c0_0 = arith.constant 0 : index
    %c0_1 = arith.constant 0 : index
    %0 = vector.load %arg2[%c0, %c0_0, %c0_1] : memref<1x4x384xf32, #tpu.memory_space<vmem>>, vector<1x4x256xf32>
    %1 = vector.shape_cast %0 : vector<1x4x256xf32> to vector<4x256xf32>
    %c0_2 = arith.constant 0 : index
    %c0_3 = arith.constant 0 : index
    %c0_4 = arith.constant 0 : index
    %2 = vector.load %arg3[%c0_2, %c0_3, %c0_4] : memref<9x8x4xf32, #tpu.memory_space<vmem>>, vector<1x8x4xf32>
    %3 = vector.shape_cast %2 : vector<1x8x4xf32> to vector<8x4xf32>
    %cst = arith.constant dense<0.000000e+00> : vector<8x256xf32>
    %4 = tpu.matmul %3, %1, %cst {dimension_numbers = #tpu.dot_dimension_numbers<[1], [0], [0], [1], [0, 0, 1, 1], [], []>} : vector<8x4xf32>, vector<4x256xf32>, vector<8x256xf32> -> vector<8x256xf32>
    %c0_5 = arith.constant 0 : index
    %c0_6 = arith.constant 0 : index
    %c1 = arith.constant 1 : index
    %5 = vector.load %arg2[%c0_5, %c0_6, %c1] : memref<1x4x384xf32, #tpu.memory_space<vmem>>, vector<1x4x256xf32>
    %6 = vector.shape_cast %5 : vector<1x4x256xf32> to vector<4x256xf32>
    %c1_7 = arith.constant 1 : index
    %c0_8 = arith.constant 0 : index
    %c0_9 = arith.constant 0 : index
    %7 = vector.load %arg3[%c1_7, %c0_8, %c0_9] : memref<9x8x4xf32, #tpu.memory_space<vmem>>, vector<1x8x4xf32>
    %8 = vector.shape_cast %7 : vector<1x8x4xf32> to vector<8x4xf32>
    %cst_10 = arith.constant dense<0.000000e+00> : vector<8x256xf32>
    %9 = tpu.matmul %8, %6, %cst_10 {dimension_numbers = #tpu.dot_dimension_numbers<[1], [0], [0], [1], [0, 0, 1, 1], [], []>} : vector<8x4xf32>, vector<4x256xf32>, vector<8x256xf32> -> vector<8x256xf32>
    %10 = arith.addf %4, %9 : vector<8x256xf32>
    %c0_11 = arith.constant 0 : index
    %c0_12 = arith.constant 0 : index
    %c2 = arith.constant 2 : index
    %11 = vector.load %arg2[%c0_11, %c0_12, %c2] : memref<1x4x384xf32, #tpu.memory_space<vmem>>, vector<1x4x256xf32>
    %12 = vector.shape_cast %11 : vector<1x4x256xf32> to vector<4x256xf32>
    %c2_13 = arith.constant 2 : index
    %c0_14 = arith.constant 0 : index
    %c0_15 = arith.constant 0 : index
    %13 = vector.load %arg3[%c2_13, %c0_14, %c0_15] : memref<9x8x4xf32, #tpu.memory_space<vmem>>, vector<1x8x4xf32>
    %14 = vector.shape_cast %13 : vector<1x8x4xf32> to vector<8x4xf32>
    %cst_16 = arith.constant dense<0.000000e+00> : vector<8x256xf32>
    %15 = tpu.matmul %14, %12, %cst_16 {dimension_numbers = #tpu.dot_dimension_numbers<[1], [0], [0], [1], [0, 0, 1, 1], [], []>} : vector<8x4xf32>, vector<4x256xf32>, vector<8x256xf32> -> vector<8x256xf32>
    %16 = arith.addf %10, %15 : vector<8x256xf32>
    %c0_17 = arith.constant 0 : index
    %c0_18 = arith.constant 0 : index
    %c16 = arith.constant 16 : index
    %17 = vector.load %arg2[%c0_17, %c0_18, %c16] : memref<1x4x384xf32, #tpu.memory_space<vmem>>, vector<1x4x256xf32>
    %18 = vector.shape_cast %17 : vector<1x4x256xf32> to vector<4x256xf32>
    %c3 = arith.constant 3 : index
    %c0_19 = arith.constant 0 : index
    %c0_20 = arith.constant 0 : index
    %19 = vector.load %arg3[%c3, %c0_19, %c0_20] : memref<9x8x4xf32, #tpu.memory_space<vmem>>, vector<1x8x4xf32>
    %20 = vector.shape_cast %19 : vector<1x8x4xf32> to vector<8x4xf32>
    %cst_21 = arith.constant dense<0.000000e+00> : vector<8x256xf32>
    %21 = tpu.matmul %20, %18, %cst_21 {dimension_numbers = #tpu.dot_dimension_numbers<[1], [0], [0], [1], [0, 0, 1, 1], [], []>} : vector<8x4xf32>, vector<4x256xf32>, vector<8x256xf32> -> vector<8x256xf32>
    %22 = arith.addf %16, %21 : vector<8x256xf32>
    %c0_22 = arith.constant 0 : index
    %c0_23 = arith.constant 0 : index
    %c17 = arith.constant 17 : index
    %23 = vector.load %arg2[%c0_22, %c0_23, %c17] : memref<1x4x384xf32, #tpu.memory_space<vmem>>, vector<1x4x256xf32>
    %24 = vector.shape_cast %23 : vector<1x4x256xf32> to vector<4x256xf32>
    %c4 = arith.constant 4 : index
    %c0_24 = arith.constant 0 : index
    %c0_25 = arith.constant 0 : index
    %25 = vector.load %arg3[%c4, %c0_24, %c0_25] : memref<9x8x4xf32, #tpu.memory_space<vmem>>, vector<1x8x4xf32>
    %26 = vector.shape_cast %25 : vector<1x8x4xf32> to vector<8x4xf32>
    %cst_26 = arith.constant dense<0.000000e+00> : vector<8x256xf32>
    %27 = tpu.matmul %26, %24, %cst_26 {dimension_numbers = #tpu.dot_dimension_numbers<[1], [0], [0], [1], [0, 0, 1, 1], [], []>} : vector<8x4xf32>, vector<4x256xf32>, vector<8x256xf32> -> vector<8x256xf32>
    %28 = arith.addf %22, %27 : vector<8x256xf32>
    %c0_27 = arith.constant 0 : index
    %c0_28 = arith.constant 0 : index
    %c18 = arith.constant 18 : index
    %29 = vector.load %arg2[%c0_27, %c0_28, %c18] : memref<1x4x384xf32, #tpu.memory_space<vmem>>, vector<1x4x256xf32>
    %30 = vector.shape_cast %29 : vector<1x4x256xf32> to vector<4x256xf32>
    %c5 = arith.constant 5 : index
    %c0_29 = arith.constant 0 : index
    %c0_30 = arith.constant 0 : index
    %31 = vector.load %arg3[%c5, %c0_29, %c0_30] : memref<9x8x4xf32, #tpu.memory_space<vmem>>, vector<1x8x4xf32>
    %32 = vector.shape_cast %31 : vector<1x8x4xf32> to vector<8x4xf32>
    %cst_31 = arith.constant dense<0.000000e+00> : vector<8x256xf32>
    %33 = tpu.matmul %32, %30, %cst_31 {dimension_numbers = #tpu.dot_dimension_numbers<[1], [0], [0], [1], [0, 0, 1, 1], [], []>} : vector<8x4xf32>, vector<4x256xf32>, vector<8x256xf32> -> vector<8x256xf32>
    %34 = arith.addf %28, %33 : vector<8x256xf32>
    %c0_32 = arith.constant 0 : index
    %c0_33 = arith.constant 0 : index
    %c32 = arith.constant 32 : index
    %35 = vector.load %arg2[%c0_32, %c0_33, %c32] : memref<1x4x384xf32, #tpu.memory_space<vmem>>, vector<1x4x256xf32>
    %36 = vector.shape_cast %35 : vector<1x4x256xf32> to vector<4x256xf32>
    %c6 = arith.constant 6 : index
    %c0_34 = arith.constant 0 : index
    %c0_35 = arith.constant 0 : index
    %37 = vector.load %arg3[%c6, %c0_34, %c0_35] : memref<9x8x4xf32, #tpu.memory_space<vmem>>, vector<1x8x4xf32>
    %38 = vector.shape_cast %37 : vector<1x8x4xf32> to vector<8x4xf32>
    %cst_36 = arith.constant dense<0.000000e+00> : vector<8x256xf32>
    %39 = tpu.matmul %38, %36, %cst_36 {dimension_numbers = #tpu.dot_dimension_numbers<[1], [0], [0], [1], [0, 0, 1, 1], [], []>} : vector<8x4xf32>, vector<4x256xf32>, vector<8x256xf32> -> vector<8x256xf32>
    %40 = arith.addf %34, %39 : vector<8x256xf32>
    %c0_37 = arith.constant 0 : index
    %c0_38 = arith.constant 0 : index
    %c33 = arith.constant 33 : index
    %41 = vector.load %arg2[%c0_37, %c0_38, %c33] : memref<1x4x384xf32, #tpu.memory_space<vmem>>, vector<1x4x256xf32>
    %42 = vector.shape_cast %41 : vector<1x4x256xf32> to vector<4x256xf32>
    %c7 = arith.constant 7 : index
    %c0_39 = arith.constant 0 : index
    %c0_40 = arith.constant 0 : index
    %43 = vector.load %arg3[%c7, %c0_39, %c0_40] : memref<9x8x4xf32, #tpu.memory_space<vmem>>, vector<1x8x4xf32>
    %44 = vector.shape_cast %43 : vector<1x8x4xf32> to vector<8x4xf32>
    %cst_41 = arith.constant dense<0.000000e+00> : vector<8x256xf32>
    %45 = tpu.matmul %44, %42, %cst_41 {dimension_numbers = #tpu.dot_dimension_numbers<[1], [0], [0], [1], [0, 0, 1, 1], [], []>} : vector<8x4xf32>, vector<4x256xf32>, vector<8x256xf32> -> vector<8x256xf32>
    %46 = arith.addf %40, %45 : vector<8x256xf32>
    %c0_42 = arith.constant 0 : index
    %c0_43 = arith.constant 0 : index
    %c34 = arith.constant 34 : index
    %47 = vector.load %arg2[%c0_42, %c0_43, %c34] : memref<1x4x384xf32, #tpu.memory_space<vmem>>, vector<1x4x256xf32>
    %48 = vector.shape_cast %47 : vector<1x4x256xf32> to vector<4x256xf32>
    %c8 = arith.constant 8 : index
    %c0_44 = arith.constant 0 : index
    %c0_45 = arith.constant 0 : index
    %49 = vector.load %arg3[%c8, %c0_44, %c0_45] : memref<9x8x4xf32, #tpu.memory_space<vmem>>, vector<1x8x4xf32>
    %50 = vector.shape_cast %49 : vector<1x8x4xf32> to vector<8x4xf32>
    %cst_46 = arith.constant dense<0.000000e+00> : vector<8x256xf32>
    %51 = tpu.matmul %50, %48, %cst_46 {dimension_numbers = #tpu.dot_dimension_numbers<[1], [0], [0], [1], [0, 0, 1, 1], [], []>} : vector<8x4xf32>, vector<4x256xf32>, vector<8x256xf32> -> vector<8x256xf32>
    %52 = arith.addf %46, %51 : vector<8x256xf32>
    %c0_47 = arith.constant 0 : index
    %c0_48 = arith.constant 0 : index
    %53 = vector.load %arg4[%c0_47, %c0_48] : memref<8x1xf32, #tpu.memory_space<vmem>>, vector<8x1xf32>
    %54 = vector.broadcast %53 : vector<8x1xf32> to vector<8x256xf32>
    %55 = arith.addf %52, %54 : vector<8x256xf32>
    %c0_49 = arith.constant 0 : index
    %56 = memref.load %arg1[%c0_49] : memref<1xf32, #tpu.memory_space<smem>>
    %cst_50 = arith.constant 0.000000e+00 : f32
    %57 = vector.broadcast %cst_50 : f32 to vector<8x256xf32>
    %58 = arith.cmpf ogt, %55, %57 : vector<8x256xf32>
    %59 = vector.broadcast %56 : f32 to vector<8x256xf32>
    %60 = arith.mulf %59, %55 : vector<8x256xf32>
    %61 = arith.select %58, %55, %60 : vector<8x256xi1>, vector<8x256xf32>
    %c0_51 = arith.constant 0 : index
    %c0_52 = arith.constant 0 : index
    %c0_53 = arith.constant 0 : index
    %62 = vector.load %arg5[%c0_51, %c0_52, %c0_53] : memref<1x8x256xf32, #tpu.memory_space<vmem>>, vector<1x8x256xf32>
    %63 = vector.shape_cast %62 : vector<1x8x256xf32> to vector<8x256xf32>
    %64 = vector.shape_cast %61 : vector<8x256xf32> to vector<1x8x256xf32>
    tpu.vector_store %arg5[%c0_51, %c0_52, %c0_53], %64 {strides = array<i32>} : memref<1x8x256xf32, #tpu.memory_space<vmem>>, vector<1x8x256xf32>,
    return
  }
  func.func @transform_0(%arg0: i32) -> i32 {
    %c0_i32 = arith.constant 0 : i32
    %c0_i32_0 = arith.constant 0 : i32
    return %c0_i32 : i32
  }
  func.func @transform_1(%arg0: i32) -> (i32, i32, i32) {
    %c0_i32 = arith.constant 0 : i32
    %c0_i32_0 = arith.constant 0 : i32
    %c0_i32_1 = arith.constant 0 : i32
    return %arg0, %c0_i32, %c0_i32_0 : i32, i32, i32
  }
  func.func @transform_2(%arg0: i32) -> (i32, i32, i32) {
    %c0_i32 = arith.constant 0 : i32
    %c0_i32_0 = arith.constant 0 : i32
    %c0_i32_1 = arith.constant 0 : i32
    %c0_i32_2 = arith.constant 0 : i32
    return %c0_i32, %c0_i32_0, %c0_i32_1 : i32, i32, i32
  }
  func.func @transform_3(%arg0: i32) -> (i32, i32) {
    %c0_i32 = arith.constant 0 : i32
    %c0_i32_0 = arith.constant 0 : i32
    %c0_i32_1 = arith.constant 0 : i32
    return %c0_i32, %c0_i32_0 : i32, i32
  }
  func.func @transform_4(%arg0: i32) -> (i32, i32, i32) {
    %c0_i32 = arith.constant 0 : i32
    %c0_i32_0 = arith.constant 0 : i32
    %c0_i32_1 = arith.constant 0 : i32
    return %arg0, %c0_i32, %c0_i32_0 : i32, i32, i32
  }
}

</mosaic_0001>

<llo_original>
// kernel: conv2d_layer.1
$region0: #{conv2d_layer.1}
  #allocation0 [shape = 'u32[]', space=smem, size = 0x4, offset = 0x4, fixed_abs, tag = 'smem constant byte address 0x4 - core index']
  #allocation1 [shape = 'u32[144,128]{1,0:T(1,128)}', space=vmem, size = 0x12000, scoped, tag = 'internal scratch']
  #allocation2 [shape = 'f32[1]{0:T(128)S(6)}', space=smem, size = 0x200, scoped, tag = 'scoped memory for conv2d_layer.1']
  %s0 = inlined_call_operand.<no memory space> [shape: f32[1], index: 0, kind: input, shape index: {}]
  %s1 = inlined_call_operand.vmem [shape: f32[2,4,384], index: 1, kind: input, shape index: {}]
  %s2 = inlined_call_operand.vmem [shape: f32[9,8,4], index: 2, kind: input, shape index: {}]
  %s3 = inlined_call_operand.vmem [shape: f32[8,1], index: 3, kind: input, shape index: {}]
  %s4 = inlined_call_operand.vmem [shape: f32[2,8,256], index: 4, kind: output, shape index: {}]
  %s5 = sld [smem:[#allocation0]]
  $region49: #{conv2d_layer.1} parent=0
    _
  %s7 = ssub.s32 1, %s5
  %s8 = scalar_select 0, %s7, %s5
  %9 = sst [smem:[#allocation2]] %s0
  loop: start=0, step=1, limit=4
  $region2: #{conv2d_layer.1} parent=0 // loop_pre_header
    _
  $region3: #{conv2d_layer.1} parent=0 // loop_header
    %s11 = sphi 0, %s15
    %p12 = scmp.ge.s32.totalorder %s11, 4
    %s19 = sphi 0, %s19
    %s21 = sphi 0, %s19
    %s22 = sphi 0, %s21
    %s36 = sphi 0, %s22
    %s42 = sphi 0, %s44
    %s45 = sphi 0, %s42
    %s46 = sphi 0, %s45
    %s62 = sphi 0, %s46
    %s66 = sphi 0, %s66
    %s68 = sphi 0, %s66
    %s69 = sphi 0, %s68
    %s83 = sphi 0, %s69
    %s87 = sphi 0, %s87
    %s89 = sphi 0, %s87
    %s90 = sphi 0, %s89
    %s104 = sphi 0, %s90
    %s110 = sphi 0, %s112
    %s113 = sphi 0, %s110
    %s114 = sphi 0, %s113
    %s130 = sphi 0, %s114
  $region4: #{conv2d_layer.1} parent=0 // loop_header_branch
    %14 = sbr.rel (%p12) target = $region8
  $region5: #{conv2d_layer.1} parent=0 // loop_body
    %s16 = ssub.s32 %s11, 1
    %s17 = ssub.s32 %s11, 2
    %s18 = sadd.s32 %s11, 1
    %s20 = sadd.s32 %s19, 1
    %p23 = scmp.eq.s32.totalorder %s11, 1
    %p24 = scmp.ne.s32.totalorder %s19, %s21
    %p25 = scmp.eq.s32.totalorder %s11, 0
    %p26 = por %p24, %p25
    %p27 = scmp.ne.s32.totalorder %s19, %s21
    %p28 = scmp.eq.s32.totalorder %s16, 1
    %p29 = por %p27, %p28
    %p30 = scmp.ne.s32.totalorder %s21, %s22
    %p31 = scmp.eq.s32.totalorder %s16, 0
    %p32 = por %p30, %p31
    %p33 = scmp.ne.s32.totalorder %s21, %s22
    %p34 = scmp.eq.s32.totalorder %s17, 1
    %p35 = por %p33, %p34
    %p37 = scmp.ne.s32.totalorder %s22, %s36
    %p38 = scmp.eq.s32.totalorder %s17, 0
    %p39 = por %p37, %p38
    %s40 = ssub.s32 %s11, %s18
    %p41 = scmp.eq.s32.totalorder %s40, 0
    %s43 = sadd.s32 %s42, 1
    %s44 = scalar_select %p41, %s42, %s43
    %p47 = pneg %p41
    %p48 = scmp.eq.s32.totalorder %s11, 1
    %p49 = por %p47, %p48
    %p50 = scmp.ne.s32.totalorder %s42, %s45
    %p51 = scmp.eq.s32.totalorder %s11, 0
    %p52 = por %p50, %p51
    %p53 = scmp.ne.s32.totalorder %s42, %s45
    %p54 = scmp.eq.s32.totalorder %s16, 1
    %p55 = por %p53, %p54
    %p56 = scmp.ne.s32.totalorder %s45, %s46
    %p57 = scmp.eq.s32.totalorder %s16, 0
    %p58 = por %p56, %p57
    %p59 = scmp.ne.s32.totalorder %s45, %s46
    %p60 = scmp.eq.s32.totalorder %s17, 1
    %p61 = por %p59, %p60
    %p63 = scmp.ne.s32.totalorder %s46, %s62
    %p64 = scmp.eq.s32.totalorder %s17, 0
    %p65 = por %p63, %p64
    %s67 = sadd.s32 %s66, 1
    %p70 = scmp.eq.s32.totalorder %s11, 1
    %p71 = scmp.ne.s32.totalorder %s66, %s68
    %p72 = scmp.eq.s32.totalorder %s11, 0
    %p73 = por %p71, %p72
    %p74 = scmp.ne.s32.totalorder %s66, %s68
    %p75 = scmp.eq.s32.totalorder %s16, 1
    %p76 = por %p74, %p75
    %p77 = scmp.ne.s32.totalorder %s68, %s69
    %p78 = scmp.eq.s32.totalorder %s16, 0
    %p79 = por %p77, %p78
    %p80 = scmp.ne.s32.totalorder %s68, %s69
    %p81 = scmp.eq.s32.totalorder %s17, 1
    %p82 = por %p80, %p81
    %p84 = scmp.ne.s32.totalorder %s69, %s83
    %p85 = scmp.eq.s32.totalorder %s17, 0
    %p86 = por %p84, %p85
    %s88 = sadd.s32 %s87, 1
    %p91 = scmp.eq.s32.totalorder %s11, 1
    %p92 = scmp.ne.s32.totalorder %s87, %s89
    %p93 = scmp.eq.s32.totalorder %s11, 0
    %p94 = por %p92, %p93
    %p95 = scmp.ne.s32.totalorder %s87, %s89
    %p96 = scmp.eq.s32.totalorder %s16, 1
    %p97 = por %p95, %p96
    %p98 = scmp.ne.s32.totalorder %s89, %s90
    %p99 = scmp.eq.s32.totalorder %s16, 0
    %p100 = por %p98, %p99
    %p101 = scmp.ne.s32.totalorder %s89, %s90
    %p102 = scmp.eq.s32.totalorder %s17, 1
    %p103 = por %p101, %p102
    %p105 = scmp.ne.s32.totalorder %s90, %s104
    %p106 = scmp.eq.s32.totalorder %s17, 0
    %p107 = por %p105, %p106
    %s108 = ssub.s32 %s11, %s18
    %p109 = scmp.eq.s32.totalorder %s108, 0
    %s111 = sadd.s32 %s110, 1
    %s112 = scalar_select %p109, %s110, %s111
    %p115 = pneg %p109
    %p116 = scmp.eq.s32.totalorder %s11, 1
    %p117 = por %p115, %p116
    %p118 = scmp.ne.s32.totalorder %s110, %s113
    %p119 = scmp.eq.s32.totalorder %s11, 0
    %p120 = por %p118, %p119
    %p121 = scmp.ne.s32.totalorder %s110, %s113
    %p122 = scmp.eq.s32.totalorder %s16, 1
    %p123 = por %p121, %p122
    %p124 = scmp.ne.s32.totalorder %s113, %s114
    %p125 = scmp.eq.s32.totalorder %s16, 0
    %p126 = por %p124, %p125
    %p127 = scmp.ne.s32.totalorder %s113, %s114
    %p128 = scmp.eq.s32.totalorder %s17, 1
    %p129 = por %p127, %p128
    %p131 = scmp.ne.s32.totalorder %s114, %s130
    %p132 = scmp.eq.s32.totalorder %s17, 0
    %p133 = por %p131, %p132
    %p134 = scmp.le.s32.totalorder 1, %s11
    %p135 = scmp.lt.s32.totalorder %s11, 3
    %p136 = pnand %p134, %p135
    %p137 = pneg %p136
    // Predicated region
    $region9: #{conv2d_layer.1} parent=5 // pred_check
      _
    $region10: #{conv2d_layer.1} parent=5 // pred_check_branch
      %139 = sbr.rel (%p136) target = $region12
    $region11: #{conv2d_layer.1} parent=5 // pred_region
      %s140 = ssub.s32 %s11, 1
      // Predicated region
      $region13: #{conv2d_layer.1} parent=11 // pred_check
        %p141 = pneg %p32
      $region14: #{conv2d_layer.1} parent=11 // pred_check_branch
        %143 = sbr.rel (%p141) target = $region16
      $region15: #{conv2d_layer.1} parent=11 // pred_region
        _
      $region16: #{conv2d_layer.1} parent=11 // pred_fallthru
        _
      // Predicated region
      $region17: #{conv2d_layer.1} parent=11 // pred_check
        %p144 = pneg %p79
      $region18: #{conv2d_layer.1} parent=11 // pred_check_branch
        %146 = sbr.rel (%p144) target = $region20
      $region19: #{conv2d_layer.1} parent=11 // pred_region
        _
      $region20: #{conv2d_layer.1} parent=11 // pred_fallthru
        _
      // Predicated region
      $region21: #{conv2d_layer.1} parent=11 // pred_check
        %p147 = pneg %p100
      $region22: #{conv2d_layer.1} parent=11 // pred_check_branch
        %149 = sbr.rel (%p147) target = $region24
      $region23: #{conv2d_layer.1} parent=11 // pred_region
        _
      $region24: #{conv2d_layer.1} parent=11 // pred_fallthru
        _
    $region12: #{conv2d_layer.1} parent=5 // pred_fallthru
      _
    %p150 = scmp.lt.s32.totalorder %s11, 2
    // Predicated region
    $region25: #{conv2d_layer.1} parent=5 // pred_check
      %p151 = pneg %p150
    $region26: #{conv2d_layer.1} parent=5 // pred_check_branch
      %153 = sbr.rel (%p151) target = $region28
    $region27: #{conv2d_layer.1} parent=5 // pred_region
      // Predicated region
      $region29: #{conv2d_layer.1} parent=27 // pred_check
        %p154 = pneg %p52
      $region30: #{conv2d_layer.1} parent=27 // pred_check_branch
        %156 = sbr.rel (%p154) target = $region32
      $region31: #{conv2d_layer.1} parent=27 // pred_region
        %p157 = scmp.lt.s32.totalorder %s11, 1
        %s158 = scalar_select %p157, %s11, 1
        %s159 = smul.addr %s158, 3
        %s160 = smul.addr %s159, 4
        %s161 = scalar_lea.vmem %s1, %s160
      $region32: #{conv2d_layer.1} parent=27 // pred_fallthru
        _
    $region28: #{conv2d_layer.1} parent=5 // pred_fallthru
      _
    %p162 = scmp.le.s32.totalorder 1, %s11
    %p163 = scmp.lt.s32.totalorder %s11, 3
    %p164 = pnand %p162, %p163
    %p165 = pneg %p164
    // Predicated region
    $region33: #{conv2d_layer.1} parent=5 // pred_check
      _
    $region34: #{conv2d_layer.1} parent=5 // pred_check_branch
      %167 = sbr.rel (%p164) target = $region36
    $region35: #{conv2d_layer.1} parent=5 // pred_region
      %s168 = ssub.s32 %s11, 1
      %p169 = pneg %p32
      %p170 = pneg %p29
      %p171 = scmp.lt.s32.totalorder %s16, 1
      %s172 = scalar_select %p171, %s16, 1
      %s173 = smul.addr %s172, 3
      %s174 = smul.addr %s173, 4
      %s175 = scalar_lea.vmem %s1, %s174
      %p176 = pneg %p58
      %p177 = pneg %p55
      %p178 = pneg %p79
      %p179 = pneg %p76
      %p180 = pneg %p100
      %p181 = pneg %p97
      %p182 = pneg %p126
      %p183 = pneg %p123
      %p184 = scmp.lt.s32.totalorder %s16, 1
      %s185 = scalar_select %p184, %s16, 1
      %s186 = smul.addr %s185, 2
      %s187 = smul.addr %s186, 8
      %s188 = scalar_lea.vmem %s4, %s187
      %p189 = scmp.lt.s32.totalorder %s16, 1
      %s190 = scalar_select %p189, %s16, 1
      %s191 = smul.addr %s190, 3
      %s192 = smul.addr %s191, 4
      %s193 = scalar_lea.vmem %s1, %s192
      %p194 = scmp.lt.s32.totalorder %s16, 1
      %s195 = scalar_select %p194, %s16, 1
      %s196 = smul.addr %s195, 2
      %s197 = smul.addr %s196, 8
      %s198 = scalar_lea.vmem %s4, %s197
      %v199 = vld [vmem:[%s193] sm:$0xff]
      %v200 = vld [vmem:[%s2] sm:$0xff]
      %v201 = vld [vmem:[%s193] sm:$0xff]
      %v202 = vld [vmem:[%s193 + $0x8] sm:$0xf]
      %s203 = scalar_lea.vmem %s2, 8
      %v204 = vld [vmem:[%s203] sm:$0xff]
      %v207 = vcombine.high %v201, %v201
      %208 = vrot.lane.b32.xlu0 %v201, 127
      %v209 = vpop.permute.xlu0 %208
      %210 = vrot.lane.b32.xlu0 %v207, 127
      %v211 = vpop.permute.xlu0 %210
      %212 = vrot.lane.b32.xlu0 %v202, 127
      %v213 = vpop.permute.xlu0 %212
      %vm214 = vcmask 1039360
      %v215 = vsel %vm214, %v209, %v211
      %v216 = vsel %vm214, %v211, %v213
      %vm217 = vcmask 31744
      %v219 = vsel %vm217, %v204, 0
      %vm221 = vcmask 1043456
      %v222 = vsel %vm221, %v215, 0
      %v224 = vsel %vm221, %v216, 0
      %226 = vmatprep.subr.mxu0 0.0
      %227 = vmatpush1.msra.mxu0 0.0
      %228 = vmatprep.subr.mxu0 0.0
      %229 = vmatpush1.msra.mxu0 0.0
      %230 = vmatprep.subr.mxu0 0.0
      %231 = vmatpush1.msra.mxu0 0.0
      %232 = vmatprep.subr.mxu0 0.0
      %233 = vmatpush1.msra.mxu0 0.0
      %234 = vmatprep.subr.mxu0 0.0
      %235 = vmatpush1.msra.mxu0 0.0
      %236 = vmatprep.subr.mxu0 0.0
      %237 = vmatpush1.msra.mxu0 0.0
      %238 = vmatprep.subr.mxu0 0.0
      %239 = vmatpush1.msra.mxu0 0.0
      %240 = vmatprep.subr.mxu0 0.0
      %241 = vmatpush1.msra.mxu0 0.0
      %242 = vmatprep.subr.mxu0 0.0
      %243 = vmatpush1.msra.mxu0 0.0
      %244 = vmatprep.subr.mxu0 0.0
      %245 = vmatpush1.msra.mxu0 0.0
      %246 = vmatprep.subr.mxu0 0.0
      %247 = vmatpush1.msra.mxu0 0.0
      %248 = vmatprep.subr.mxu0 0.0
      %249 = vmatpush1.msra.mxu0 0.0
      %250 = vmatprep.subr.mxu0 0.0
      %251 = vmatpush1.msra.mxu0 0.0
      %252 = vmatprep.subr.mxu0 0.0
      %253 = vmatpush1.msra.mxu0 0.0
      %254 = vmatprep.subr.mxu0 0.0
      %255 = vmatpush1.msra.mxu0 0.0
      %256 = vmatprep.subr.mxu0 %v224
      %257 = vmatpush1.msra.mxu0 %v222
      %258 = vmatprep.subr.mxu0 0.0
      %259 = vmatpush2.msra.mxu0 0.0
      %260 = vmatprep.subr.mxu0 0.0
      %261 = vmatpush2.msra.mxu0 0.0
      %262 = vmatprep.subr.mxu0 0.0
      %263 = vmatpush2.msra.mxu0 0.0
      %264 = vmatprep.subr.mxu0 0.0
      %265 = vmatpush2.msra.mxu0 0.0
      %266 = vmatprep.subr.mxu0 0.0
      %267 = vmatpush2.msra.mxu0 0.0
      %268 = vmatprep.subr.mxu0 0.0
      %269 = vmatpush2.msra.mxu0 0.0
      %270 = vmatprep.subr.mxu0 0.0
      %271 = vmatpush2.msra.mxu0 0.0
      %272 = vmatprep.subr.mxu0 0.0
      %273 = vmatpush2.msra.mxu0 0.0
      %274 = vmatprep.subr.mxu0 0.0
      %275 = vmatpush2.msra.mxu0 0.0
      %276 = vmatprep.subr.mxu0 0.0
      %277 = vmatpush2.msra.mxu0 0.0
      %278 = vmatprep.subr.mxu0 0.0
      %279 = vmatpush2.msra.mxu0 0.0
      %280 = vmatprep.subr.mxu0 0.0
      %281 = vmatpush2.msra.mxu0 0.0
      %282 = vmatprep.subr.mxu0 0.0
      %283 = vmatpush2.msra.mxu0 0.0
      %284 = vmatprep.subr.mxu0 0.0
      %285 = vmatpush2.msra.mxu0 0.0
      %286 = vmatprep.subr.mxu0 0.0
      %287 = vmatpush2.msra.mxu0 0.0
      %288 = vmatprep.subr.mxu0 0.0
      %289 = vmatpush2.msra.mxu0 0.0
      %290 = vmatprep.mubr.f32.mxu0 0.0
      %291 = vmatmul.mubr.f32.gmra.mxu0 %v219
      %v292 = vpop.f32.mrf.mxu0
      %v293 = vadd.f32 0.0, %v292
      %v294 = vpop.f32.mrf.mxu0
      %v295 = vadd.f32 0.0, %v294
      %296 = vdwg.mxu0
      %v298 = vcombine.high %v199, %v199
      %v300 = vsel %vm217, %v200, 0
      %v302 = vsel %vm221, %v199, 0
      %v304 = vsel %vm221, %v298, 0
      %306 = vmatprep.subr.mxu0 0.0
      %307 = vmatpush1.msra.mxu0 0.0
      %308 = vmatprep.subr.mxu0 0.0
      %309 = vmatpush1.msra.mxu0 0.0
      %310 = vmatprep.subr.mxu0 0.0
      %311 = vmatpush1.msra.mxu0 0.0
      %312 = vmatprep.subr.mxu0 0.0
      %313 = vmatpush1.msra.mxu0 0.0
      %314 = vmatprep.subr.mxu0 0.0
      %315 = vmatpush1.msra.mxu0 0.0
      %316 = vmatprep.subr.mxu0 0.0
      %317 = vmatpush1.msra.mxu0 0.0
      %318 = vmatprep.subr.mxu0 0.0
      %319 = vmatpush1.msra.mxu0 0.0
      %320 = vmatprep.subr.mxu0 0.0
      %321 = vmatpush1.msra.mxu0 0.0
      %322 = vmatprep.subr.mxu0 0.0
      %323 = vmatpush1.msra.mxu0 0.0
      %324 = vmatprep.subr.mxu0 0.0
      %325 = vmatpush1.msra.mxu0 0.0
      %326 = vmatprep.subr.mxu0 0.0
      %327 = vmatpush1.msra.mxu0 0.0
      %328 = vmatprep.subr.mxu0 0.0
      %329 = vmatpush1.msra.mxu0 0.0
      %330 = vmatprep.subr.mxu0 0.0
      %331 = vmatpush1.msra.mxu0 0.0
      %332 = vmatprep.subr.mxu0 0.0
      %333 = vmatpush1.msra.mxu0 0.0
      %334 = vmatprep.subr.mxu0 0.0
      %335 = vmatpush1.msra.mxu0 0.0
      %336 = vmatprep.subr.mxu0 %v304
      %337 = vmatpush1.msra.mxu0 %v302
      %338 = vmatprep.subr.mxu0 0.0
      %339 = vmatpush2.msra.mxu0 0.0
      %340 = vmatprep.subr.mxu0 0.0
      %341 = vmatpush2.msra.mxu0 0.0
      %342 = vmatprep.subr.mxu0 0.0
      %343 = vmatpush2.msra.mxu0 0.0
      %344 = vmatprep.subr.mxu0 0.0
      %345 = vmatpush2.msra.mxu0 0.0
      %346 = vmatprep.subr.mxu0 0.0
      %347 = vmatpush2.msra.mxu0 0.0
      %348 = vmatprep.subr.mxu0 0.0
      %349 = vmatpush2.msra.mxu0 0.0
      %350 = vmatprep.subr.mxu0 0.0
      %351 = vmatpush2.msra.mxu0 0.0
      %352 = vmatprep.subr.mxu0 0.0
      %353 = vmatpush2.msra.mxu0 0.0
      %354 = vmatprep.subr.mxu0 0.0
      %355 = vmatpush2.msra.mxu0 0.0
      %356 = vmatprep.subr.mxu0 0.0
      %357 = vmatpush2.msra.mxu0 0.0
      %358 = vmatprep.subr.mxu0 0.0
      %359 = vmatpush2.msra.mxu0 0.0
      %360 = vmatprep.subr.mxu0 0.0
      %361 = vmatpush2.msra.mxu0 0.0
      %362 = vmatprep.subr.mxu0 0.0
      %363 = vmatpush2.msra.mxu0 0.0
      %364 = vmatprep.subr.mxu0 0.0
      %365 = vmatpush2.msra.mxu0 0.0
      %366 = vmatprep.subr.mxu0 0.0
      %367 = vmatpush2.msra.mxu0 0.0
      %368 = vmatprep.subr.mxu0 0.0
      %369 = vmatpush2.msra.mxu0 0.0
      %370 = vmatprep.mubr.f32.mxu0 0.0
      %371 = vmatmul.mubr.f32.gmra.mxu0 %v300
      %v372 = vpop.f32.mrf.mxu0
      %v373 = vadd.f32 %v293, %v372
      %v374 = vpop.f32.mrf.mxu0
      %v375 = vadd.f32 %v295, %v374
      %376 = vdwg.mxu0
      %v377 = vld [vmem:[%s193] sm:$0xff]
      %v378 = vld [vmem:[%s193 + $0x8] sm:$0xf]
      %s379 = scalar_lea.vmem %s2, 16
      %v380 = vld [vmem:[%s379] sm:$0xff]
      %v383 = vcombine.high %v377, %v377
      %384 = vrot.lane.b32.xlu0 %v377, 126
      %v385 = vpop.permute.xlu0 %384
      %386 = vrot.lane.b32.xlu0 %v383, 126
      %v387 = vpop.permute.xlu0 %386
      %388 = vrot.lane.b32.xlu0 %v378, 126
      %v389 = vpop.permute.xlu0 %388
      %vm390 = vcmask 1031168
      %v391 = vsel %vm390, %v385, %v387
      %v392 = vsel %vm390, %v387, %v389
      %v394 = vsel %vm217, %v380, 0
      %v396 = vsel %vm221, %v391, 0
      %v398 = vsel %vm221, %v392, 0
      %400 = vmatprep.subr.mxu0 0.0
      %401 = vmatpush1.msra.mxu0 0.0
      %402 = vmatprep.subr.mxu0 0.0
      %403 = vmatpush1.msra.mxu0 0.0
      %404 = vmatprep.subr.mxu0 0.0
      %405 = vmatpush1.msra.mxu0 0.0
      %406 = vmatprep.subr.mxu0 0.0
      %407 = vmatpush1.msra.mxu0 0.0
      %408 = vmatprep.subr.mxu0 0.0
      %409 = vmatpush1.msra.mxu0 0.0
      %410 = vmatprep.subr.mxu0 0.0
      %411 = vmatpush1.msra.mxu0 0.0
      %412 = vmatprep.subr.mxu0 0.0
      %413 = vmatpush1.msra.mxu0 0.0
      %414 = vmatprep.subr.mxu0 0.0
      %415 = vmatpush1.msra.mxu0 0.0
      %416 = vmatprep.subr.mxu0 0.0
      %417 = vmatpush1.msra.mxu0 0.0
      %418 = vmatprep.subr.mxu0 0.0
      %419 = vmatpush1.msra.mxu0 0.0
      %420 = vmatprep.subr.mxu0 0.0
      %421 = vmatpush1.msra.mxu0 0.0
      %422 = vmatprep.subr.mxu0 0.0
      %423 = vmatpush1.msra.mxu0 0.0
      %424 = vmatprep.subr.mxu0 0.0
      %425 = vmatpush1.msra.mxu0 0.0
      %426 = vmatprep.subr.mxu0 0.0
      %427 = vmatpush1.msra.mxu0 0.0
      %428 = vmatprep.subr.mxu0 0.0
      %429 = vmatpush1.msra.mxu0 0.0
      %430 = vmatprep.subr.mxu0 %v398
      %431 = vmatpush1.msra.mxu0 %v396
      %432 = vmatprep.subr.mxu0 0.0
      %433 = vmatpush2.msra.mxu0 0.0
      %434 = vmatprep.subr.mxu0 0.0
      %435 = vmatpush2.msra.mxu0 0.0
      %436 = vmatprep.subr.mxu0 0.0
      %437 = vmatpush2.msra.mxu0 0.0
      %438 = vmatprep.subr.mxu0 0.0
      %439 = vmatpush2.msra.mxu0 0.0
      %440 = vmatprep.subr.mxu0 0.0
      %441 = vmatpush2.msra.mxu0 0.0
      %442 = vmatprep.subr.mxu0 0.0
      %443 = vmatpush2.msra.mxu0 0.0
      %444 = vmatprep.subr.mxu0 0.0
      %445 = vmatpush2.msra.mxu0 0.0
      %446 = vmatprep.subr.mxu0 0.0
      %447 = vmatpush2.msra.mxu0 0.0
      %448 = vmatprep.subr.mxu0 0.0
      %449 = vmatpush2.msra.mxu0 0.0
      %450 = vmatprep.subr.mxu0 0.0
      %451 = vmatpush2.msra.mxu0 0.0
      %452 = vmatprep.subr.mxu0 0.0
      %453 = vmatpush2.msra.mxu0 0.0
      %454 = vmatprep.subr.mxu0 0.0
      %455 = vmatpush2.msra.mxu0 0.0
      %456 = vmatprep.subr.mxu0 0.0
      %457 = vmatpush2.msra.mxu0 0.0
      %458 = vmatprep.subr.mxu0 0.0
      %459 = vmatpush2.msra.mxu0 0.0
      %460 = vmatprep.subr.mxu0 0.0
      %461 = vmatpush2.msra.mxu0 0.0
      %462 = vmatprep.subr.mxu0 0.0
      %463 = vmatpush2.msra.mxu0 0.0
      %464 = vmatprep.mubr.f32.mxu0 0.0
      %465 = vmatmul.mubr.f32.gmra.mxu0 %v394
      %v466 = vpop.f32.mrf.mxu0
      %v467 = vadd.f32 0.0, %v466
      %v468 = vpop.f32.mrf.mxu0
      %v469 = vadd.f32 0.0, %v468
      %470 = vdwg.mxu0
      %v471 = vadd.f32 %v373, %v467
      %v472 = vadd.f32 %v375, %v469
      %v473 = vld [vmem:[%s193] sm:$0xff]
      %v474 = vld [vmem:[%s193 + $0x8] sm:$0xf]
      %s475 = scalar_lea.vmem %s2, 24
      %v476 = vld [vmem:[%s475] sm:$0xff]
      %v479 = vcombine.high %v473, %v473
      %480 = vrot.lane.b32.xlu0 %v473, 112
      %v481 = vpop.permute.xlu0 %480
      %482 = vrot.lane.b32.xlu0 %v479, 112
      %v483 = vpop.permute.xlu0 %482
      %484 = vrot.lane.b32.xlu0 %v474, 112
      %v485 = vpop.permute.xlu0 %484
      %vm486 = vcmask 916480
      %v487 = vsel %vm486, %v481, %v483
      %v488 = vsel %vm486, %v483, %v485
      %v490 = vsel %vm217, %v476, 0
      %v492 = vsel %vm221, %v487, 0
      %v494 = vsel %vm221, %v488, 0
      %496 = vmatprep.subr.mxu0 0.0
      %497 = vmatpush1.msra.mxu0 0.0
      %498 = vmatprep.subr.mxu0 0.0
      %499 = vmatpush1.msra.mxu0 0.0
      %500 = vmatprep.subr.mxu0 0.0
      %501 = vmatpush1.msra.mxu0 0.0
      %502 = vmatprep.subr.mxu0 0.0
      %503 = vmatpush1.msra.mxu0 0.0
      %504 = vmatprep.subr.mxu0 0.0
      %505 = vmatpush1.msra.mxu0 0.0
      %506 = vmatprep.subr.mxu0 0.0
      %507 = vmatpush1.msra.mxu0 0.0
      %508 = vmatprep.subr.mxu0 0.0
      %509 = vmatpush1.msra.mxu0 0.0
      %510 = vmatprep.subr.mxu0 0.0
      %511 = vmatpush1.msra.mxu0 0.0
      %512 = vmatprep.subr.mxu0 0.0
      %513 = vmatpush1.msra.mxu0 0.0
      %514 = vmatprep.subr.mxu0 0.0
      %515 = vmatpush1.msra.mxu0 0.0
      %516 = vmatprep.subr.mxu0 0.0
      %517 = vmatpush1.msra.mxu0 0.0
      %518 = vmatprep.subr.mxu0 0.0
      %519 = vmatpush1.msra.mxu0 0.0
      %520 = vmatprep.subr.mxu0 0.0
      %521 = vmatpush1.msra.mxu0 0.0
      %522 = vmatprep.subr.mxu0 0.0
      %523 = vmatpush1.msra.mxu0 0.0
      %524 = vmatprep.subr.mxu0 0.0
      %525 = vmatpush1.msra.mxu0 0.0
      %526 = vmatprep.subr.mxu0 %v494
      %527 = vmatpush1.msra.mxu0 %v492
      %528 = vmatprep.subr.mxu0 0.0
      %529 = vmatpush2.msra.mxu0 0.0
      %530 = vmatprep.subr.mxu0 0.0
      %531 = vmatpush2.msra.mxu0 0.0
      %532 = vmatprep.subr.mxu0 0.0
      %533 = vmatpush2.msra.mxu0 0.0
      %534 = vmatprep.subr.mxu0 0.0
      %535 = vmatpush2.msra.mxu0 0.0
      %536 = vmatprep.subr.mxu0 0.0
      %537 = vmatpush2.msra.mxu0 0.0
      %538 = vmatprep.subr.mxu0 0.0
      %539 = vmatpush2.msra.mxu0 0.0
      %540 = vmatprep.subr.mxu0 0.0
      %541 = vmatpush2.msra.mxu0 0.0
      %542 = vmatprep.subr.mxu0 0.0
      %543 = vmatpush2.msra.mxu0 0.0
      %544 = vmatprep.subr.mxu0 0.0
      %545 = vmatpush2.msra.mxu0 0.0
      %546 = vmatprep.subr.mxu0 0.0
      %547 = vmatpush2.msra.mxu0 0.0
      %548 = vmatprep.subr.mxu0 0.0
      %549 = vmatpush2.msra.mxu0 0.0
      %550 = vmatprep.subr.mxu0 0.0
      %551 = vmatpush2.msra.mxu0 0.0
      %552 = vmatprep.subr.mxu0 0.0
      %553 = vmatpush2.msra.mxu0 0.0
      %554 = vmatprep.subr.mxu0 0.0
      %555 = vmatpush2.msra.mxu0 0.0
      %556 = vmatprep.subr.mxu0 0.0
      %557 = vmatpush2.msra.mxu0 0.0
      %558 = vmatprep.subr.mxu0 0.0
      %559 = vmatpush2.msra.mxu0 0.0
      %560 = vmatprep.mubr.f32.mxu0 0.0
      %561 = vmatmul.mubr.f32.gmra.mxu0 %v490
      %v562 = vpop.f32.mrf.mxu0
      %v563 = vadd.f32 0.0, %v562
      %v564 = vpop.f32.mrf.mxu0
      %v565 = vadd.f32 0.0, %v564
      %566 = vdwg.mxu0
      %v567 = vadd.f32 %v471, %v563
      %v568 = vadd.f32 %v472, %v565
      %v569 = vld [vmem:[%s193] sm:$0xff]
      %v570 = vld [vmem:[%s193 + $0x8] sm:$0xf]
      %s571 = scalar_lea.vmem %s2, 32
      %v572 = vld [vmem:[%s571] sm:$0xff]
      %v575 = vcombine.high %v569, %v569
      %576 = vrot.lane.b32.xlu0 %v569, 111
      %v577 = vpop.permute.xlu0 %576
      %578 = vrot.lane.b32.xlu0 %v575, 111
      %v579 = vpop.permute.xlu0 %578
      %580 = vrot.lane.b32.xlu0 %v570, 111
      %v581 = vpop.permute.xlu0 %580
      %vm582 = vcmask 908288
      %v583 = vsel %vm582, %v577, %v579
      %v584 = vsel %vm582, %v579, %v581
      %v586 = vsel %vm217, %v572, 0
      %v588 = vsel %vm221, %v583, 0
      %v590 = vsel %vm221, %v584, 0
      %592 = vmatprep.subr.mxu0 0.0
      %593 = vmatpush1.msra.mxu0 0.0
      %594 = vmatprep.subr.mxu0 0.0
      %595 = vmatpush1.msra.mxu0 0.0
      %596 = vmatprep.subr.mxu0 0.0
      %597 = vmatpush1.msra.mxu0 0.0
      %598 = vmatprep.subr.mxu0 0.0
      %599 = vmatpush1.msra.mxu0 0.0
      %600 = vmatprep.subr.mxu0 0.0
      %601 = vmatpush1.msra.mxu0 0.0
      %602 = vmatprep.subr.mxu0 0.0
      %603 = vmatpush1.msra.mxu0 0.0
      %604 = vmatprep.subr.mxu0 0.0
      %605 = vmatpush1.msra.mxu0 0.0
      %606 = vmatprep.subr.mxu0 0.0
      %607 = vmatpush1.msra.mxu0 0.0
      %608 = vmatprep.subr.mxu0 0.0
      %609 = vmatpush1.msra.mxu0 0.0
      %610 = vmatprep.subr.mxu0 0.0
      %611 = vmatpush1.msra.mxu0 0.0
      %612 = vmatprep.subr.mxu0 0.0
      %613 = vmatpush1.msra.mxu0 0.0
      %614 = vmatprep.subr.mxu0 0.0
      %615 = vmatpush1.msra.mxu0 0.0
      %616 = vmatprep.subr.mxu0 0.0
      %617 = vmatpush1.msra.mxu0 0.0
      %618 = vmatprep.subr.mxu0 0.0
      %619 = vmatpush1.msra.mxu0 0.0
      %620 = vmatprep.subr.mxu0 0.0
      %621 = vmatpush1.msra.mxu0 0.0
      %622 = vmatprep.subr.mxu0 %v590
      %623 = vmatpush1.msra.mxu0 %v588
      %624 = vmatprep.subr.mxu0 0.0
      %625 = vmatpush2.msra.mxu0 0.0
      %626 = vmatprep.subr.mxu0 0.0
      %627 = vmatpush2.msra.mxu0 0.0
      %628 = vmatprep.subr.mxu0 0.0
      %629 = vmatpush2.msra.mxu0 0.0
      %630 = vmatprep.subr.mxu0 0.0
      %631 = vmatpush2.msra.mxu0 0.0
      %632 = vmatprep.subr.mxu0 0.0
      %633 = vmatpush2.msra.mxu0 0.0
      %634 = vmatprep.subr.mxu0 0.0
      %635 = vmatpush2.msra.mxu0 0.0
      %636 = vmatprep.subr.mxu0 0.0
      %637 = vmatpush2.msra.mxu0 0.0
      %638 = vmatprep.subr.mxu0 0.0
      %639 = vmatpush2.msra.mxu0 0.0
      %640 = vmatprep.subr.mxu0 0.0
      %641 = vmatpush2.msra.mxu0 0.0
      %642 = vmatprep.subr.mxu0 0.0
      %643 = vmatpush2.msra.mxu0 0.0
      %644 = vmatprep.subr.mxu0 0.0
      %645 = vmatpush2.msra.mxu0 0.0
      %646 = vmatprep.subr.mxu0 0.0
      %647 = vmatpush2.msra.mxu0 0.0
      %648 = vmatprep.subr.mxu0 0.0
      %649 = vmatpush2.msra.mxu0 0.0
      %650 = vmatprep.subr.mxu0 0.0
      %651 = vmatpush2.msra.mxu0 0.0
      %652 = vmatprep.subr.mxu0 0.0
      %653 = vmatpush2.msra.mxu0 0.0
      %654 = vmatprep.subr.mxu0 0.0
      %655 = vmatpush2.msra.mxu0 0.0
      %656 = vmatprep.mubr.f32.mxu0 0.0
      %657 = vmatmul.mubr.f32.gmra.mxu0 %v586
      %v658 = vpop.f32.mrf.mxu0
      %v659 = vadd.f32 0.0, %v658
      %v660 = vpop.f32.mrf.mxu0
      %v661 = vadd.f32 0.0, %v660
      %662 = vdwg.mxu0
      %v663 = vadd.f32 %v567, %v659
      %v664 = vadd.f32 %v568, %v661
      %v665 = vld [vmem:[%s193] sm:$0xff]
      %v666 = vld [vmem:[%s193 + $0x8] sm:$0xf]
      %s667 = scalar_lea.vmem %s2, 40
      %v668 = vld [vmem:[%s667] sm:$0xff]
      %v671 = vcombine.high %v665, %v665
      %672 = vrot.lane.b32.xlu0 %v665, 110
      %v673 = vpop.permute.xlu0 %672
      %674 = vrot.lane.b32.xlu0 %v671, 110
      %v675 = vpop.permute.xlu0 %674
      %676 = vrot.lane.b32.xlu0 %v666, 110
      %v677 = vpop.permute.xlu0 %676
      %vm678 = vcmask 900096
      %v679 = vsel %vm678, %v673, %v675
      %v680 = vsel %vm678, %v675, %v677
      %v682 = vsel %vm217, %v668, 0
      %v684 = vsel %vm221, %v679, 0
      %v686 = vsel %vm221, %v680, 0
      %688 = vmatprep.subr.mxu0 0.0
      %689 = vmatpush1.msra.mxu0 0.0
      %690 = vmatprep.subr.mxu0 0.0
      %691 = vmatpush1.msra.mxu0 0.0
      %692 = vmatprep.subr.mxu0 0.0
      %693 = vmatpush1.msra.mxu0 0.0
      %694 = vmatprep.subr.mxu0 0.0
      %695 = vmatpush1.msra.mxu0 0.0
      %696 = vmatprep.subr.mxu0 0.0
      %697 = vmatpush1.msra.mxu0 0.0
      %698 = vmatprep.subr.mxu0 0.0
      %699 = vmatpush1.msra.mxu0 0.0
      %700 = vmatprep.subr.mxu0 0.0
      %701 = vmatpush1.msra.mxu0 0.0
      %702 = vmatprep.subr.mxu0 0.0
      %703 = vmatpush1.msra.mxu0 0.0
      %704 = vmatprep.subr.mxu0 0.0
      %705 = vmatpush1.msra.mxu0 0.0
      %706 = vmatprep.subr.mxu0 0.0
      %707 = vmatpush1.msra.mxu0 0.0
      %708 = vmatprep.subr.mxu0 0.0
      %709 = vmatpush1.msra.mxu0 0.0
      %710 = vmatprep.subr.mxu0 0.0
      %711 = vmatpush1.msra.mxu0 0.0
      %712 = vmatprep.subr.mxu0 0.0
      %713 = vmatpush1.msra.mxu0 0.0
      %714 = vmatprep.subr.mxu0 0.0
      %715 = vmatpush1.msra.mxu0 0.0
      %716 = vmatprep.subr.mxu0 0.0
      %717 = vmatpush1.msra.mxu0 0.0
      %718 = vmatprep.subr.mxu0 %v686
      %719 = vmatpush1.msra.mxu0 %v684
      %720 = vmatprep.subr.mxu0 0.0
      %721 = vmatpush2.msra.mxu0 0.0
      %722 = vmatprep.subr.mxu0 0.0
      %723 = vmatpush2.msra.mxu0 0.0
      %724 = vmatprep.subr.mxu0 0.0
      %725 = vmatpush2.msra.mxu0 0.0
      %726 = vmatprep.subr.mxu0 0.0
      %727 = vmatpush2.msra.mxu0 0.0
      %728 = vmatprep.subr.mxu0 0.0
      %729 = vmatpush2.msra.mxu0 0.0
      %730 = vmatprep.subr.mxu0 0.0
      %731 = vmatpush2.msra.mxu0 0.0
      %732 = vmatprep.subr.mxu0 0.0
      %733 = vmatpush2.msra.mxu0 0.0
      %734 = vmatprep.subr.mxu0 0.0
      %735 = vmatpush2.msra.mxu0 0.0
      %736 = vmatprep.subr.mxu0 0.0
      %737 = vmatpush2.msra.mxu0 0.0
      %738 = vmatprep.subr.mxu0 0.0
      %739 = vmatpush2.msra.mxu0 0.0
      %740 = vmatprep.subr.mxu0 0.0
      %741 = vmatpush2.msra.mxu0 0.0
      %742 = vmatprep.subr.mxu0 0.0
      %743 = vmatpush2.msra.mxu0 0.0
      %744 = vmatprep.subr.mxu0 0.0
      %745 = vmatpush2.msra.mxu0 0.0
      %746 = vmatprep.subr.mxu0 0.0
      %747 = vmatpush2.msra.mxu0 0.0
      %748 = vmatprep.subr.mxu0 0.0
      %749 = vmatpush2.msra.mxu0 0.0
      %750 = vmatprep.subr.mxu0 0.0
      %751 = vmatpush2.msra.mxu0 0.0
      %752 = vmatprep.mubr.f32.mxu0 0.0
      %753 = vmatmul.mubr.f32.gmra.mxu0 %v682
      %v754 = vpop.f32.mrf.mxu0
      %v755 = vadd.f32 0.0, %v754
      %v756 = vpop.f32.mrf.mxu0
      %v757 = vadd.f32 0.0, %v756
      %758 = vdwg.mxu0
      %v759 = vadd.f32 %v663, %v755
      %v760 = vadd.f32 %v664, %v757
      %v761 = vld [vmem:[%s193] sm:$0xff]
      %v762 = vld [vmem:[%s193 + $0x8] sm:$0xf]
      %s763 = scalar_lea.vmem %s2, 48
      %v764 = vld [vmem:[%s763] sm:$0xff]
      %v767 = vcombine.high %v761, %v761
      %768 = vrot.lane.b32.xlu0 %v761, 96
      %v769 = vpop.permute.xlu0 %768
      %770 = vrot.lane.b32.xlu0 %v767, 96
      %v771 = vpop.permute.xlu0 %770
      %772 = vrot.lane.b32.xlu0 %v762, 96
      %v773 = vpop.permute.xlu0 %772
      %vm774 = vcmask 785408
      %v775 = vsel %vm774, %v769, %v771
      %v776 = vsel %vm774, %v771, %v773
      %v778 = vsel %vm217, %v764, 0
      %v780 = vsel %vm221, %v775, 0
      %v782 = vsel %vm221, %v776, 0
      %784 = vmatprep.subr.mxu0 0.0
      %785 = vmatpush1.msra.mxu0 0.0
      %786 = vmatprep.subr.mxu0 0.0
      %787 = vmatpush1.msra.mxu0 0.0
      %788 = vmatprep.subr.mxu0 0.0
      %789 = vmatpush1.msra.mxu0 0.0
      %790 = vmatprep.subr.mxu0 0.0
      %791 = vmatpush1.msra.mxu0 0.0
      %792 = vmatprep.subr.mxu0 0.0
      %793 = vmatpush1.msra.mxu0 0.0
      %794 = vmatprep.subr.mxu0 0.0
      %795 = vmatpush1.msra.mxu0 0.0
      %796 = vmatprep.subr.mxu0 0.0
      %797 = vmatpush1.msra.mxu0 0.0
      %798 = vmatprep.subr.mxu0 0.0
      %799 = vmatpush1.msra.mxu0 0.0
      %800 = vmatprep.subr.mxu0 0.0
      %801 = vmatpush1.msra.mxu0 0.0
      %802 = vmatprep.subr.mxu0 0.0
      %803 = vmatpush1.msra.mxu0 0.0
      %804 = vmatprep.subr.mxu0 0.0
      %805 = vmatpush1.msra.mxu0 0.0
      %806 = vmatprep.subr.mxu0 0.0
      %807 = vmatpush1.msra.mxu0 0.0
      %808 = vmatprep.subr.mxu0 0.0
      %809 = vmatpush1.msra.mxu0 0.0
      %810 = vmatprep.subr.mxu0 0.0
      %811 = vmatpush1.msra.mxu0 0.0
      %812 = vmatprep.subr.mxu0 0.0
      %813 = vmatpush1.msra.mxu0 0.0
      %814 = vmatprep.subr.mxu0 %v782
      %815 = vmatpush1.msra.mxu0 %v780
      %816 = vmatprep.subr.mxu0 0.0
      %817 = vmatpush2.msra.mxu0 0.0
      %818 = vmatprep.subr.mxu0 0.0
      %819 = vmatpush2.msra.mxu0 0.0
      %820 = vmatprep.subr.mxu0 0.0
      %821 = vmatpush2.msra.mxu0 0.0
      %822 = vmatprep.subr.mxu0 0.0
      %823 = vmatpush2.msra.mxu0 0.0
      %824 = vmatprep.subr.mxu0 0.0
      %825 = vmatpush2.msra.mxu0 0.0
      %826 = vmatprep.subr.mxu0 0.0
      %827 = vmatpush2.msra.mxu0 0.0
      %828 = vmatprep.subr.mxu0 0.0
      %829 = vmatpush2.msra.mxu0 0.0
      %830 = vmatprep.subr.mxu0 0.0
      %831 = vmatpush2.msra.mxu0 0.0
      %832 = vmatprep.subr.mxu0 0.0
      %833 = vmatpush2.msra.mxu0 0.0
      %834 = vmatprep.subr.mxu0 0.0
      %835 = vmatpush2.msra.mxu0 0.0
      %836 = vmatprep.subr.mxu0 0.0
      %837 = vmatpush2.msra.mxu0 0.0
      %838 = vmatprep.subr.mxu0 0.0
      %839 = vmatpush2.msra.mxu0 0.0
      %840 = vmatprep.subr.mxu0 0.0
      %841 = vmatpush2.msra.mxu0 0.0
      %842 = vmatprep.subr.mxu0 0.0
      %843 = vmatpush2.msra.mxu0 0.0
      %844 = vmatprep.subr.mxu0 0.0
      %845 = vmatpush2.msra.mxu0 0.0
      %846 = vmatprep.subr.mxu0 0.0
      %847 = vmatpush2.msra.mxu0 0.0
      %848 = vmatprep.mubr.f32.mxu0 0.0
      %849 = vmatmul.mubr.f32.gmra.mxu0 %v778
      %v850 = vpop.f32.mrf.mxu0
      %v851 = vadd.f32 0.0, %v850
      %v852 = vpop.f32.mrf.mxu0
      %v853 = vadd.f32 0.0, %v852
      %854 = vdwg.mxu0
      %v855 = vadd.f32 %v759, %v851
      %v856 = vadd.f32 %v760, %v853
      %v857 = vld [vmem:[%s193] sm:$0xff]
      %v858 = vld [vmem:[%s193 + $0x8] sm:$0xf]
      %s859 = scalar_lea.vmem %s2, 56
      %v860 = vld [vmem:[%s859] sm:$0xff]
      %v863 = vcombine.high %v857, %v857
      %864 = vrot.lane.b32.xlu0 %v857, 95
      %v865 = vpop.permute.xlu0 %864
      %866 = vrot.lane.b32.xlu0 %v863, 95
      %v867 = vpop.permute.xlu0 %866
      %868 = vrot.lane.b32.xlu0 %v858, 95
      %v869 = vpop.permute.xlu0 %868
      %vm870 = vcmask 777216
      %v871 = vsel %vm870, %v865, %v867
      %v872 = vsel %vm870, %v867, %v869
      %v874 = vsel %vm217, %v860, 0
      %v876 = vsel %vm221, %v871, 0
      %v878 = vsel %vm221, %v872, 0
      %880 = vmatprep.subr.mxu0 0.0
      %881 = vmatpush1.msra.mxu0 0.0
      %882 = vmatprep.subr.mxu0 0.0
      %883 = vmatpush1.msra.mxu0 0.0
      %884 = vmatprep.subr.mxu0 0.0
      %885 = vmatpush1.msra.mxu0 0.0
      %886 = vmatprep.subr.mxu0 0.0
      %887 = vmatpush1.msra.mxu0 0.0
      %888 = vmatprep.subr.mxu0 0.0
      %889 = vmatpush1.msra.mxu0 0.0
      %890 = vmatprep.subr.mxu0 0.0
      %891 = vmatpush1.msra.mxu0 0.0
      %892 = vmatprep.subr.mxu0 0.0
      %893 = vmatpush1.msra.mxu0 0.0
      %894 = vmatprep.subr.mxu0 0.0
      %895 = vmatpush1.msra.mxu0 0.0
      %896 = vmatprep.subr.mxu0 0.0
      %897 = vmatpush1.msra.mxu0 0.0
      %898 = vmatprep.subr.mxu0 0.0
      %899 = vmatpush1.msra.mxu0 0.0
      %900 = vmatprep.subr.mxu0 0.0
      %901 = vmatpush1.msra.mxu0 0.0
      %902 = vmatprep.subr.mxu0 0.0
      %903 = vmatpush1.msra.mxu0 0.0
      %904 = vmatprep.subr.mxu0 0.0
      %905 = vmatpush1.msra.mxu0 0.0
      %906 = vmatprep.subr.mxu0 0.0
      %907 = vmatpush1.msra.mxu0 0.0
      %908 = vmatprep.subr.mxu0 0.0
      %909 = vmatpush1.msra.mxu0 0.0
      %910 = vmatprep.subr.mxu0 %v878
      %911 = vmatpush1.msra.mxu0 %v876
      %912 = vmatprep.subr.mxu0 0.0
      %913 = vmatpush2.msra.mxu0 0.0
      %914 = vmatprep.subr.mxu0 0.0
      %915 = vmatpush2.msra.mxu0 0.0
      %916 = vmatprep.subr.mxu0 0.0
      %917 = vmatpush2.msra.mxu0 0.0
      %918 = vmatprep.subr.mxu0 0.0
      %919 = vmatpush2.msra.mxu0 0.0
      %920 = vmatprep.subr.mxu0 0.0
      %921 = vmatpush2.msra.mxu0 0.0
      %922 = vmatprep.subr.mxu0 0.0
      %923 = vmatpush2.msra.mxu0 0.0
      %924 = vmatprep.subr.mxu0 0.0
      %925 = vmatpush2.msra.mxu0 0.0
      %926 = vmatprep.subr.mxu0 0.0
      %927 = vmatpush2.msra.mxu0 0.0
      %928 = vmatprep.subr.mxu0 0.0
      %929 = vmatpush2.msra.mxu0 0.0
      %930 = vmatprep.subr.mxu0 0.0
      %931 = vmatpush2.msra.mxu0 0.0
      %932 = vmatprep.subr.mxu0 0.0
      %933 = vmatpush2.msra.mxu0 0.0
      %934 = vmatprep.subr.mxu0 0.0
      %935 = vmatpush2.msra.mxu0 0.0
      %936 = vmatprep.subr.mxu0 0.0
      %937 = vmatpush2.msra.mxu0 0.0
      %938 = vmatprep.subr.mxu0 0.0
      %939 = vmatpush2.msra.mxu0 0.0
      %940 = vmatprep.subr.mxu0 0.0
      %941 = vmatpush2.msra.mxu0 0.0
      %942 = vmatprep.subr.mxu0 0.0
      %943 = vmatpush2.msra.mxu0 0.0
      %944 = vmatprep.mubr.f32.mxu0 0.0
      %945 = vmatmul.mubr.f32.gmra.mxu0 %v874
      %v946 = vpop.f32.mrf.mxu0
      %v947 = vadd.f32 0.0, %v946
      %v948 = vpop.f32.mrf.mxu0
      %v949 = vadd.f32 0.0, %v948
      %950 = vdwg.mxu0
      %v951 = vadd.f32 %v855, %v947
      %v952 = vadd.f32 %v856, %v949
      %v953 = vld [vmem:[%s193] sm:$0xff]
      %v954 = vld [vmem:[%s193 + $0x8] sm:$0xf]
      %s955 = scalar_lea.vmem %s2, 64
      %v956 = vld [vmem:[%s955] sm:$0xff]
      %v959 = vcombine.high %v953, %v953
      %960 = vrot.lane.b32.xlu0 %v953, 94
      %v961 = vpop.permute.xlu0 %960
      %962 = vrot.lane.b32.xlu0 %v959, 94
      %v963 = vpop.permute.xlu0 %962
      %964 = vrot.lane.b32.xlu0 %v954, 94
      %v965 = vpop.permute.xlu0 %964
      %vm966 = vcmask 769024
      %v967 = vsel %vm966, %v961, %v963
      %v968 = vsel %vm966, %v963, %v965
      %v970 = vsel %vm217, %v956, 0
      %v972 = vsel %vm221, %v967, 0
      %v974 = vsel %vm221, %v968, 0
      %976 = vmatprep.subr.mxu0 0.0
      %977 = vmatpush1.msra.mxu0 0.0
      %978 = vmatprep.subr.mxu0 0.0
      %979 = vmatpush1.msra.mxu0 0.0
      %980 = vmatprep.subr.mxu0 0.0
      %981 = vmatpush1.msra.mxu0 0.0
      %982 = vmatprep.subr.mxu0 0.0
      %983 = vmatpush1.msra.mxu0 0.0
      %984 = vmatprep.subr.mxu0 0.0
      %985 = vmatpush1.msra.mxu0 0.0
      %986 = vmatprep.subr.mxu0 0.0
      %987 = vmatpush1.msra.mxu0 0.0
      %988 = vmatprep.subr.mxu0 0.0
      %989 = vmatpush1.msra.mxu0 0.0
      %990 = vmatprep.subr.mxu0 0.0
      %991 = vmatpush1.msra.mxu0 0.0
      %992 = vmatprep.subr.mxu0 0.0
      %993 = vmatpush1.msra.mxu0 0.0
      %994 = vmatprep.subr.mxu0 0.0
      %995 = vmatpush1.msra.mxu0 0.0
      %996 = vmatprep.subr.mxu0 0.0
      %997 = vmatpush1.msra.mxu0 0.0
      %998 = vmatprep.subr.mxu0 0.0
      %999 = vmatpush1.msra.mxu0 0.0
      %1000 = vmatprep.subr.mxu0 0.0
      %1001 = vmatpush1.msra.mxu0 0.0
      %1002 = vmatprep.subr.mxu0 0.0
      %1003 = vmatpush1.msra.mxu0 0.0
      %1004 = vmatprep.subr.mxu0 0.0
      %1005 = vmatpush1.msra.mxu0 0.0
      %1006 = vmatprep.subr.mxu0 %v974
      %1007 = vmatpush1.msra.mxu0 %v972
      %1008 = vmatprep.subr.mxu0 0.0
      %1009 = vmatpush2.msra.mxu0 0.0
      %1010 = vmatprep.subr.mxu0 0.0
      %1011 = vmatpush2.msra.mxu0 0.0
      %1012 = vmatprep.subr.mxu0 0.0
      %1013 = vmatpush2.msra.mxu0 0.0
      %1014 = vmatprep.subr.mxu0 0.0
      %1015 = vmatpush2.msra.mxu0 0.0
      %1016 = vmatprep.subr.mxu0 0.0
      %1017 = vmatpush2.msra.mxu0 0.0
      %1018 = vmatprep.subr.mxu0 0.0
      %1019 = vmatpush2.msra.mxu0 0.0
      %1020 = vmatprep.subr.mxu0 0.0
      %1021 = vmatpush2.msra.mxu0 0.0
      %1022 = vmatprep.subr.mxu0 0.0
      %1023 = vmatpush2.msra.mxu0 0.0
      %1024 = vmatprep.subr.mxu0 0.0
      %1025 = vmatpush2.msra.mxu0 0.0
      %1026 = vmatprep.subr.mxu0 0.0
      %1027 = vmatpush2.msra.mxu0 0.0
      %1028 = vmatprep.subr.mxu0 0.0
      %1029 = vmatpush2.msra.mxu0 0.0
      %1030 = vmatprep.subr.mxu0 0.0
      %1031 = vmatpush2.msra.mxu0 0.0
      %1032 = vmatprep.subr.mxu0 0.0
      %1033 = vmatpush2.msra.mxu0 0.0
      %1034 = vmatprep.subr.mxu0 0.0
      %1035 = vmatpush2.msra.mxu0 0.0
      %1036 = vmatprep.subr.mxu0 0.0
      %1037 = vmatpush2.msra.mxu0 0.0
      %1038 = vmatprep.subr.mxu0 0.0
      %1039 = vmatpush2.msra.mxu0 0.0
      %1040 = vmatprep.mubr.f32.mxu0 0.0
      %1041 = vmatmul.mubr.f32.gmra.mxu0 %v970
      %v1042 = vpop.f32.mrf.mxu0
      %v1043 = vadd.f32 0.0, %v1042
      %v1044 = vpop.f32.mrf.mxu0
      %v1045 = vadd.f32 0.0, %v1044
      %1046 = vdwg.mxu0
      %v1047 = vadd.f32 %v951, %v1043
      %v1048 = vadd.f32 %v952, %v1045
      %v1049 = vld [vmem:[%s3] sm:$0xff]
      %1051 = vset.pattern.permute.xlu0 0
      %1052 = vperm.xlu0 %1051, %v1049
      %v1053 = vpop.permute.xlu0 %1052
      %v1055 = vadd.f32 %v1047, %v1053
      %v1056 = vadd.f32 %v1048, %v1053
      %s1057 = sld [smem:[#allocation2]]
      %vm1058 = vcmp.gt.f32.partialorder %v1055, 0.0
      %vm1059 = vcmp.gt.f32.partialorder %v1056, 0.0
      %v1060 = vstv %s1057
      %v1061 = vmul.f32 %v1060, %v1055
      %v1062 = vmul.f32 %v1060, %v1056
      %v1063 = vsel %vm1058, %v1055, %v1061
      %v1064 = vsel %vm1059, %v1056, %v1062
      %1065 = vst [vmem:[%s198] sm:$0xff] %v1063
      %1066 = vst [vmem:[%s198 + $0x8] sm:$0xff] %v1064
      %p1067 = scmp.lt.s32.totalorder %s16, 1
      %s1068 = scalar_select %p1067, %s16, 1
      %s1069 = smul.addr %s1068, 2
      %s1070 = smul.addr %s1069, 8
      %s1071 = scalar_lea.vmem %s4, %s1070
      // Predicated region
      $region37: #{conv2d_layer.1} parent=35 // pred_check
        %p1072 = pneg %p123
      $region38: #{conv2d_layer.1} parent=35 // pred_check_branch
        %1074 = sbr.rel (%p1072) target = $region40
      $region39: #{conv2d_layer.1} parent=35 // pred_region
        _
      $region40: #{conv2d_layer.1} parent=35 // pred_fallthru
        _
    $region36: #{conv2d_layer.1} parent=5 // pred_fallthru
      _
    %p1075 = scmp.le.s32.totalorder 2, %s11
    // Predicated region
    $region41: #{conv2d_layer.1} parent=5 // pred_check
      %p1076 = pneg %p1075
    $region42: #{conv2d_layer.1} parent=5 // pred_check_branch
      %1078 = sbr.rel (%p1076) target = $region44
    $region43: #{conv2d_layer.1} parent=5 // pred_region
      %s1079 = ssub.s32 %s11, 2
      // Predicated region
      $region45: #{conv2d_layer.1} parent=43 // pred_check
        %p1080 = pneg %p129
      $region46: #{conv2d_layer.1} parent=43 // pred_check_branch
        %1082 = sbr.rel (%p1080) target = $region48
      $region47: #{conv2d_layer.1} parent=43 // pred_region
        %p1083 = scmp.lt.s32.totalorder %s17, 1
        %s1084 = scalar_select %p1083, %s17, 1
        %s1085 = smul.addr %s1084, 2
        %s1086 = smul.addr %s1085, 8
        %s1087 = scalar_lea.vmem %s4, %s1086
      $region48: #{conv2d_layer.1} parent=43 // pred_fallthru
        _
    $region44: #{conv2d_layer.1} parent=5 // pred_fallthru
      _
  $region6: #{conv2d_layer.1} parent=0 // loop_footer
    %s15 = sadd.s32 1, %s11
  $region7: #{conv2d_layer.1} parent=0 // loop_footer_branch
    %10 = sbr.rel target = $region3
  $region8: #{conv2d_layer.1} parent=0 // loop_exit
    _

</llo_original>
